<compile_context>
chip_gen: v5e
topology: v5e:2x2
jax: 0.10.0
libtpu: 0.0.40
codegen_flags: <defaults>
</compile_context>

<pallas_src>
from functools import partial

import jax
import jax.numpy as jnp
from jax import lax
from jax.experimental import pallas as pl
from jax.experimental.pallas import tpu as pltpu


COMMITMENT_COST = 0.25


def _round_up(x, m):
    return ((x + m - 1) // m) * m


def _cdiv(a, b):
    return -(-a // b)


def _pad_last(a, target):
    pad = target - a.shape[-1]
    if pad == 0:
        return a
    return jnp.pad(a, [(0, 0)] * (a.ndim - 1) + [(0, pad)])


def _pad_dim0(a, target):
    pad = target - a.shape[0]
    if pad == 0:
        return a
    return jnp.pad(a, [(0, pad)] + [(0, 0)] * (a.ndim - 1))


def _vmem_budget_bytes():
    """Generation-aware scoped-VMEM budget: ~half of physical capacity
    (32 MiB on v7x's 64 MiB part, 64 MiB on v5e/v6e's 128 MiB parts)."""
    cap = 128 << 20
    try:
        cap = int(getattr(pltpu.get_tpu_info(), "vmem_capacity_bytes", cap))
    except Exception:
        pass
    return (32 << 20) if cap <= (64 << 20) else (64 << 20)


def _max_tile_rows(budget_bytes, din, latent_dim, input_dim, dz_p, do_p, K):
    """Largest batch tile the VMEM budget comfortably supports."""
    cap = 2048 if budget_bytes >= (64 << 20) else 1024
    # ~f32 bytes live per batch row: double-buffered in/out blocks plus the
    # in-kernel intermediates (h1, lat, score/one_hot, quant, h2, out).
    per_row = 4 * (2 * din + 4 * latent_dim + 2 * input_dim
                   + 2 * 128 + 3 * dz_p + 2 * K + do_p)
    mem_tb = (budget_bytes // 2) // max(per_row, 1)
    mem_tb = max(256, (mem_tb // 8) * 8)
    return min(cap, mem_tb)


def _pick_batch_tile(B, max_tb):
    """Multiple-of-8 batch tile. Splits into >=2 tiles when B >= 512 (so v7x's
    second TensorCore gets work; each tile still >=256 rows), otherwise one
    tile covering the (row-padded) batch; capped by the VMEM-derived max."""
    if B >= 512:
        tb = _round_up(_cdiv(B, 2), 8)
    else:
        tb = _round_up(B, 8)
    if tb > max_tb:
        nt = _cdiv(B, max_tb)
        tb = min(_round_up(_cdiv(B, nt), 8), max_tb)
    return max(8, tb)


def _resident_spec(shape):
    """Constant-index operand (weights / biases / codebook): stays resident in
    VMEM across all grid steps -> a single buffer is enough."""
    idx = lambda i: (0, 0)
    if hasattr(pl, "Buffered"):
        try:
            return pl.BlockSpec(shape, idx, pipeline_mode=pl.Buffered(1))
        except TypeError:
            pass
    return pl.BlockSpec(shape, idx)


def vqvae_kernel(x_ref, w1_ref, b1_ref, w2_ref, b2_ref,
                 emb_ref, emb_m2_ref, e_sq_ref,
                 w3_ref, b3_ref, w4_ref, b4_ref,
                 latent_ref, quant_ref, recon_ref, loss_part_ref,
                 *, batch_size, latent_dim, input_dim):
    x = x_ref[...]                                   # [TB, Din] f32
    tb = x.shape[0]

    # ---------------- encoder (bf16 MXU operands, f32 accumulation) ---------
    # Note: bf16 operands perturb `latent` slightly vs a pure-f32 reference;
    # near-tie codebook indices may differ. Keep w2t f32 in prepare_params if
    # bit-exact argmin parity is required.
    h1 = jnp.dot(x.astype(jnp.bfloat16), w1_ref[...],
                 preferred_element_type=jnp.float32) + b1_ref[...]
    h1 = jnp.maximum(h1, 0.0)                        # ReLU
    lat = jnp.dot(h1.astype(jnp.bfloat16), w2_ref[...],
                  preferred_element_type=jnp.float32) + b2_ref[...]
    lat = jnp.maximum(lat, 0.0)                      # ReLU -> [TB, Dz_pad]
    latent_ref[...] = lat[:, :latent_dim]            # unpadded store (lane-masked)

    # ---------------- vector quantizer --------------------------------------
    # argmin_j ||lat - e_j||^2 == argmin_j (||e_j||^2 - 2<lat, e_j>); the -2 is
    # folded into emb_m2 at prep time (bf16 operands only for large codebooks).
    cross = jnp.dot(lat.astype(emb_m2_ref.dtype), emb_m2_ref[...],
                    preferred_element_type=jnp.float32)        # [TB, K]
    score = e_sq_ref[...] + cross
    K = score.shape[1]
    col = lax.broadcasted_iota(jnp.int32, score.shape, 1)
    s_min = jnp.min(score, axis=1, keepdims=True)
    idx = jnp.min(jnp.where(score <= s_min, col, K), axis=1)   # first-min tie-break
    one_hot = (col == idx[:, None]).astype(jnp.float32)
    quant = jnp.dot(one_hot, emb_ref[...],
                    preferred_element_type=jnp.float32)        # exact embedding rows
    quant_ref[...] = quant[:, :latent_dim]           # straight-through value

    # per-tile SSE partial; mask rows that are batch padding.
    rows = pl.program_id(0) * tb + lax.broadcasted_iota(jnp.int32, (tb, 1), 0)
    valid = (rows < batch_size).astype(jnp.float32)
    diff = (quant - lat) * valid                     # padded lane cols are exactly 0
    part = jnp.sum(diff * diff)
    loss_part_ref[...] = jnp.broadcast_to(part, loss_part_ref.shape)

    # ---------------- decoder ------------------------------------------------
    h2 = jnp.dot(quant.astype(jnp.bfloat16), w3_ref[...],
                 preferred_element_type=jnp.float32) + b3_ref[...]
    h2 = jnp.maximum(h2, 0.0)                        # ReLU
    out = jnp.dot(h2.astype(jnp.bfloat16), w4_ref[...],
                  preferred_element_type=jnp.float32) + b4_ref[...]
    recon_ref[...] = jax.nn.sigmoid(out[:, :input_dim])        # Sigmoid, unpadded


def prepare_params(params):
    """One-time param prep: transpose to [in, out], zero-pad hidden feature
    dims to 128 lanes for the matmuls (outputs themselves are stored unpadded),
    cast MLP weights to bf16, precompute ||e_j||^2 and (-2*E)^T."""
    latent_dim = params["w2"].shape[0]
    input_dim = params["w1"].shape[1]
    K = params["emb"].shape[0]
    dz_p = _round_up(latent_dim, 128)
    do_p = _round_up(input_dim, 128)

    w1t = params["w1"].T.astype(jnp.bfloat16)                        # [Din, 128]
    b1 = params["b1"][None, :].astype(jnp.float32)                   # [1, 128]
    w2t = _pad_last(params["w2"].T, dz_p).astype(jnp.bfloat16)       # [128, Dzp]
    b2 = _pad_last(params["b2"][None, :], dz_p).astype(jnp.float32)
    emb = _pad_last(params["emb"].astype(jnp.float32), dz_p)         # [K, Dzp] f32
    vq_dtype = jnp.bfloat16 if K >= 512 else jnp.float32
    emb_m2t = (-2.0 * emb).T.astype(vq_dtype)                        # [Dzp, K]
    e_sq = jnp.sum(params["emb"].astype(jnp.float32) ** 2, axis=1)[None, :]  # [1, K]
    w3t = _pad_dim0(params["w3"].T, dz_p).astype(jnp.bfloat16)       # [Dzp, 128]
    b3 = params["b3"][None, :].astype(jnp.float32)
    w4t = _pad_last(params["w4"].T, do_p).astype(jnp.bfloat16)       # [128, Dop]
    b4 = _pad_last(params["b4"][None, :], do_p).astype(jnp.float32)
    return dict(w1t=w1t, b1=b1, w2t=w2t, b2=b2, emb=emb, emb_m2t=emb_m2t,
                e_sq=e_sq, w3t=w3t, b3=b3, w4t=w4t, b4=b4)


@partial(jax.jit, static_argnames=("input_dim", "latent_dim"))
def vqvae_forward(x, prepared, *, input_dim, latent_dim):
    """x: [B, input_dim] float32; prepared: output of prepare_params."""
    # TODO(synk): accept x pre-cast to bf16 / lane-padded by the upstream
    # producer to halve the dominant HBM read (only a win if done upstream).
    B = x.shape[0]
    din = prepared["w1t"].shape[0]
    H = prepared["w1t"].shape[1]          # hidden width (128)
    dz_p = prepared["emb"].shape[1]       # padded latent dim (matmul lanes)
    K = prepared["emb"].shape[0]
    do_p = prepared["w4t"].shape[1]       # padded output dim (matmul lanes)

    budget = _vmem_budget_bytes()
    max_tb = _max_tile_rows(budget, din, latent_dim, input_dim, dz_p, do_p, K)
    TB = _pick_batch_tile(B, max_tb)
    B_pad = _round_up(B, TB)
    nt = B_pad // TB
    if B_pad != B:
        # row-pad only (lane dims stay unpadded); padded rows are masked out of
        # the loss inside the kernel and sliced off below.
        x = jnp.pad(x, ((0, B_pad - B), (0, 0)))

    rowblk = lambda i: (i, 0)             # batch-tiled activations

    in_specs = [
        pl.BlockSpec((TB, din), rowblk),   # x
        _resident_spec((din, H)),          # w1t (bf16)
        _resident_spec((1, H)),            # b1
        _resident_spec((H, dz_p)),         # w2t (bf16)
        _resident_spec((1, dz_p)),         # b2
        _resident_spec((K, dz_p)),         # emb (f32, exact lookup values)
        _resident_spec((dz_p, K)),         # (-2*emb)^T (f32 or bf16 for big K)
        _resident_spec((1, K)),            # ||e||^2 (f32)
        _resident_spec((dz_p, H)),         # w3t (bf16)
        _resident_spec((1, H)),            # b3
        _resident_spec((H, do_p)),         # w4t (bf16)
        _resident_spec((1, do_p)),         # b4
    ]
    out_specs = (
        pl.BlockSpec((TB, latent_dim), rowblk),          # latent (unpadded lanes)
        pl.BlockSpec((TB, latent_dim), rowblk),          # quantized (unpadded lanes)
        pl.BlockSpec((TB, input_dim), rowblk),           # reconstructed (unpadded)
        pl.BlockSpec((1, 8, 128), lambda i: (i, 0, 0)),  # per-tile SSE partial
    )
    out_shapes = (
        jax.ShapeDtypeStruct((B_pad, latent_dim), jnp.float32),
        jax.ShapeDtypeStruct((B_pad, latent_dim), jnp.float32),
        jax.ShapeDtypeStruct((B_pad, input_dim), jnp.float32),
        jax.ShapeDtypeStruct((nt, 8, 128), jnp.float32),
    )

    kernel = partial(vqvae_kernel, batch_size=B,
                     latent_dim=latent_dim, input_dim=input_dim)

    latent, quantized, reconstructed, parts = pl.pallas_call(
        kernel,
        grid=(nt,),
        in_specs=in_specs,
        out_specs=out_specs,
        out_shape=out_shapes,
        compiler_params=pltpu.CompilerParams(
            dimension_semantics=("parallel",),   # independent batch tiles
            vmem_limit_bytes=budget,             # 32 MiB (v7x) / 64 MiB (v5e,v6e)
        ),
    )(x, prepared["w1t"], prepared["b1"], prepared["w2t"], prepared["b2"],
      prepared["emb"], prepared["emb_m2t"], prepared["e_sq"],
      prepared["w3t"], prepared["b3"], prepared["w4t"], prepared["b4"])

    if B_pad != B:                         # only the row padding is sliced off
        latent = latent[:B]
        quantized = quantized[:B]
        reconstructed = reconstructed[:B]

    sse = jnp.sum(parts[:, 0, 0])                        # reduce per-tile partials
    mse = sse / jnp.float32(B * latent_dim)
    loss = (1.0 + COMMITMENT_COST) * mse                 # q_loss + 0.25 * e_loss
    return latent, quantized, reconstructed, loss


def init_params(key, input_dim, latent_dim, num_embeddings):
    ks = jax.random.split(key, 5)

    def lin(k, out_f, in_f):
        bound = 1.0 / jnp.sqrt(in_f)
        kw, kb = jax.random.split(k)
        w = jax.random.uniform(kw, (out_f, in_f), jnp.float32, -bound, bound)
        b = jax.random.uniform(kb, (out_f,), jnp.float32, -bound, bound)
        return w, b

    w1, b1 = lin(ks[0], 128, input_dim)
    w2, b2 = lin(ks[1], latent_dim, 128)
    emb = jax.random.uniform(ks[2], (num_embeddings, latent_dim), jnp.float32,
                             -1.0 / num_embeddings, 1.0 / num_embeddings)
    w3, b3 = lin(ks[3], 128, latent_dim)
    w4, b4 = lin(ks[4], input_dim, 128)
    return dict(w1=w1, b1=b1, w2=w2, b2=b2, emb=emb, w3=w3, b3=b3, w4=w4, b4=b4)


if __name__ == "__main__":
    key = jax.random.PRNGKey(0)
    input_dim, latent_dim, num_embeddings = 32, 16, 32

    k_x, k_p, k_x2 = jax.random.split(key, 3)
    raw_params = init_params(k_p, input_dim, latent_dim, num_embeddings)
    params = prepare_params(raw_params)   # one-time transpose/pad/cast

    # case 1: batch divisible by the tile (no row padding)
    B = 8
    x = jax.random.uniform(k_x, (B, input_dim), jnp.float32)
    latent, quantized, reconstructed, loss = vqvae_forward(
        x, params, input_dim=input_dim, latent_dim=latent_dim)
    jax.block_until_ready((latent, quantized, reconstructed, loss))

    assert latent.shape == (B, latent_dim)
    assert quantized.shape == (B, latent_dim)
    assert reconstructed.shape == (B, input_dim)
    assert loss.shape == ()
    assert bool(jnp.all(jnp.isfinite(latent)))
    assert bool(jnp.all(jnp.isfinite(quantized)))
    assert bool(jnp.all(jnp.isfinite(reconstructed)))
    assert bool(jnp.all(reconstructed >= 0.0)) and bool(jnp.all(reconstructed <= 1.0))
    assert bool(jnp.isfinite(loss)) and bool(loss >= 0.0)

    # case 2: awkward batch (exercises row-padding + in-kernel loss masking)
    B2 = 10
    x2 = jax.random.uniform(k_x2, (B2, input_dim), jnp.float32)
    latent2, quantized2, reconstructed2, loss2 = vqvae_forward(
        x2, params, input_dim=input_dim, latent_dim=latent_dim)
    jax.block_until_ready((latent2, quantized2, reconstructed2, loss2))

    assert latent2.shape == (B2, latent_dim)
    assert quantized2.shape == (B2, latent_dim)
    assert reconstructed2.shape == (B2, input_dim)
    assert bool(jnp.all(jnp.isfinite(latent2)))
    assert bool(jnp.all(jnp.isfinite(reconstructed2)))
    assert bool(jnp.isfinite(loss2)) and bool(loss2 >= 0.0)

    print("KERNEL_OK")
</pallas_src>

<mosaic_0001>
module attributes {stable_mosaic.version = 11 : i64} {
  func.func @vqvae_kernel(%arg0: i32, %arg1: memref<8x32xf32, #tpu.memory_space<vmem>>, %arg2: memref<32x128xbf16, #tpu.memory_space<vmem>>, %arg3: memref<1x128xf32, #tpu.memory_space<vmem>>, %arg4: memref<128x128xbf16, #tpu.memory_space<vmem>>, %arg5: memref<1x128xf32, #tpu.memory_space<vmem>>, %arg6: memref<32x128xf32, #tpu.memory_space<vmem>>, %arg7: memref<128x32xf32, #tpu.memory_space<vmem>>, %arg8: memref<1x32xf32, #tpu.memory_space<vmem>>, %arg9: memref<128x128xbf16, #tpu.memory_space<vmem>>, %arg10: memref<1x128xf32, #tpu.memory_space<vmem>>, %arg11: memref<128x128xbf16, #tpu.memory_space<vmem>>, %arg12: memref<1x128xf32, #tpu.memory_space<vmem>>, %arg13: memref<8x16xf32, #tpu.memory_space<vmem>>, %arg14: memref<8x16xf32, #tpu.memory_space<vmem>>, %arg15: memref<8x32xf32, #tpu.memory_space<vmem>>, %arg16: memref<1x8x128xf32, #tpu.memory_space<vmem>>) attributes {dimension_semantics = [#tpu.dimension_semantics<parallel>], iteration_bounds = array<i64: 1>, scalar_prefetch = 0 : i64, scratch_operands = 0 : i64, tpu.core_type = #tpu.core_type<tc>, window_params = [{transform_indices = @transform_0, window_bounds = array<i64: 8, 32>}, {pipeline_mode = #tpu.pipeline_mode<synchronous>, transform_indices = @transform_1, window_bounds = array<i64: 32, 128>}, {pipeline_mode = #tpu.pipeline_mode<synchronous>, transform_indices = @transform_2, window_bounds = array<i64: 1, 128>}, {pipeline_mode = #tpu.pipeline_mode<synchronous>, transform_indices = @transform_3, window_bounds = array<i64: 128, 128>}, {pipeline_mode = #tpu.pipeline_mode<synchronous>, transform_indices = @transform_4, window_bounds = array<i64: 1, 128>}, {pipeline_mode = #tpu.pipeline_mode<synchronous>, transform_indices = @transform_5, window_bounds = array<i64: 32, 128>}, {pipeline_mode = #tpu.pipeline_mode<synchronous>, transform_indices = @transform_6, window_bounds = array<i64: 128, 32>}, {pipeline_mode = #tpu.pipeline_mode<synchronous>, transform_indices = @transform_7, window_bounds = array<i64: 1, 32>}, {pipeline_mode = #tpu.pipeline_mode<synchronous>, transform_indices = @transform_8, window_bounds = array<i64: 128, 128>}, {pipeline_mode = #tpu.pipeline_mode<synchronous>, transform_indices = @transform_9, window_bounds = array<i64: 1, 128>}, {pipeline_mode = #tpu.pipeline_mode<synchronous>, transform_indices = @transform_10, window_bounds = array<i64: 128, 128>}, {pipeline_mode = #tpu.pipeline_mode<synchronous>, transform_indices = @transform_11, window_bounds = array<i64: 1, 128>}, {transform_indices = @transform_12, window_bounds = array<i64: 8, 16>}, {transform_indices = @transform_13, window_bounds = array<i64: 8, 16>}, {transform_indices = @transform_14, window_bounds = array<i64: 8, 32>}, {transform_indices = @transform_15, window_bounds = array<i64: 1, 8, 128>}]} {
    %c0 = arith.constant 0 : index
    %c0_0 = arith.constant 0 : index
    %0 = vector.load %arg1[%c0, %c0_0] : memref<8x32xf32, #tpu.memory_space<vmem>>, vector<8x32xf32>
    %1 = arith.truncf %0 : vector<8x32xf32> to vector<8x32xbf16>
    %c0_1 = arith.constant 0 : index
    %c0_2 = arith.constant 0 : index
    %2 = vector.load %arg2[%c0_1, %c0_2] : memref<32x128xbf16, #tpu.memory_space<vmem>>, vector<32x128xbf16>
    %cst = arith.constant dense<0.000000e+00> : vector<8x128xf32>
    %3 = tpu.matmul %1, %2, %cst {dimension_numbers = #tpu.dot_dimension_numbers<[1], [0], [0], [1], [0, 0, 1, 1], [], []>} : vector<8x32xbf16>, vector<32x128xbf16>, vector<8x128xf32> -> vector<8x128xf32>
    %c0_3 = arith.constant 0 : index
    %c0_4 = arith.constant 0 : index
    %4 = vector.load %arg3[%c0_3, %c0_4] : memref<1x128xf32, #tpu.memory_space<vmem>>, vector<1x128xf32>
    %5 = vector.broadcast %4 : vector<1x128xf32> to vector<8x128xf32>
    %6 = arith.addf %3, %5 : vector<8x128xf32>
    %cst_5 = arith.constant 0.000000e+00 : f32
    %7 = vector.broadcast %cst_5 : f32 to vector<8x128xf32>
    %8 = arith.maximumf %6, %7 : vector<8x128xf32>
    %9 = arith.truncf %8 : vector<8x128xf32> to vector<8x128xbf16>
    %c0_6 = arith.constant 0 : index
    %c0_7 = arith.constant 0 : index
    %10 = vector.load %arg4[%c0_6, %c0_7] : memref<128x128xbf16, #tpu.memory_space<vmem>>, vector<128x128xbf16>
    %cst_8 = arith.constant dense<0.000000e+00> : vector<8x128xf32>
    %11 = tpu.matmul %9, %10, %cst_8 {dimension_numbers = #tpu.dot_dimension_numbers<[1], [0], [0], [1], [0, 0, 1, 1], [], []>} : vector<8x128xbf16>, vector<128x128xbf16>, vector<8x128xf32> -> vector<8x128xf32>
    %c0_9 = arith.constant 0 : index
    %c0_10 = arith.constant 0 : index
    %12 = vector.load %arg5[%c0_9, %c0_10] : memref<1x128xf32, #tpu.memory_space<vmem>>, vector<1x128xf32>
    %13 = vector.broadcast %12 : vector<1x128xf32> to vector<8x128xf32>
    %14 = arith.addf %11, %13 : vector<8x128xf32>
    %cst_11 = arith.constant 0.000000e+00 : f32
    %15 = vector.broadcast %cst_11 : f32 to vector<8x128xf32>
    %16 = arith.maximumf %14, %15 : vector<8x128xf32>
    %17 = vector.extract_strided_slice %16 {offsets = [0, 0], sizes = [8, 16], strides = [1, 1]} : vector<8x128xf32> to vector<8x16xf32>
    %c0_12 = arith.constant 0 : index
    %c0_13 = arith.constant 0 : index
    %18 = vector.load %arg13[%c0_12, %c0_13] : memref<8x16xf32, #tpu.memory_space<vmem>>, vector<8x16xf32>
    tpu.vector_store %arg13[%c0_12, %c0_13], %17 {strides = array<i32>} : memref<8x16xf32, #tpu.memory_space<vmem>>, vector<8x16xf32>,
    %c0_14 = arith.constant 0 : index
    %c0_15 = arith.constant 0 : index
    %19 = vector.load %arg7[%c0_14, %c0_15] : memref<128x32xf32, #tpu.memory_space<vmem>>, vector<128x32xf32>
    %cst_16 = arith.constant dense<0.000000e+00> : vector<8x32xf32>
    %20 = tpu.matmul %16, %19, %cst_16 {dimension_numbers = #tpu.dot_dimension_numbers<[1], [0], [0], [1], [0, 0, 1, 1], [], []>} : vector<8x128xf32>, vector<128x32xf32>, vector<8x32xf32> -> vector<8x32xf32>
    %c0_17 = arith.constant 0 : index
    %c0_18 = arith.constant 0 : index
    %21 = vector.load %arg8[%c0_17, %c0_18] : memref<1x32xf32, #tpu.memory_space<vmem>>, vector<1x32xf32>
    %22 = vector.broadcast %21 : vector<1x32xf32> to vector<8x32xf32>
    %23 = arith.addf %22, %20 : vector<8x32xf32>
    %24 = tpu.iota {dimensions = array<i32: 1>} : vector<8x32xi32>
    %cst_19 = arith.constant dense<0x7F800000> : vector<8xf32>
    %25 = vector.multi_reduction <minimumf>, %23, %cst_19 [1] : vector<8x32xf32> to vector<8xf32>
    %26 = vector.shape_cast %25 : vector<8xf32> to vector<8x1xf32>
    %27 = vector.broadcast %26 : vector<8x1xf32> to vector<8x32xf32>
    %28 = arith.cmpf ole, %23, %27 : vector<8x32xf32>
    %c32_i32 = arith.constant 32 : i32
    %29 = vector.broadcast %c32_i32 : i32 to vector<8x32xi32>
    %30 = arith.select %28, %24, %29 : vector<8x32xi1>, vector<8x32xi32>
    %cst_20 = arith.constant dense<2147483647> : vector<8xi32>
    %31 = vector.multi_reduction <minsi>, %30, %cst_20 [1] : vector<8x32xi32> to vector<8xi32>
    %32 = vector.shape_cast %31 : vector<8xi32> to vector<8x1xi32>
    %33 = vector.broadcast %32 : vector<8x1xi32> to vector<8x32xi32>
    %34 = arith.cmpi eq, %24, %33 : vector<8x32xi32>
    %35 = arith.extui %34 : vector<8x32xi1> to vector<8x32xi32>
    %36 = arith.sitofp %35 : vector<8x32xi32> to vector<8x32xf32>
    %c0_21 = arith.constant 0 : index
    %c0_22 = arith.constant 0 : index
    %37 = vector.load %arg6[%c0_21, %c0_22] : memref<32x128xf32, #tpu.memory_space<vmem>>, vector<32x128xf32>
    %cst_23 = arith.constant dense<0.000000e+00> : vector<8x128xf32>
    %38 = tpu.matmul %36, %37, %cst_23 {dimension_numbers = #tpu.dot_dimension_numbers<[1], [0], [0], [1], [0, 0, 1, 1], [], []>} : vector<8x32xf32>, vector<32x128xf32>, vector<8x128xf32> -> vector<8x128xf32>
    %39 = vector.extract_strided_slice %38 {offsets = [0, 0], sizes = [8, 16], strides = [1, 1]} : vector<8x128xf32> to vector<8x16xf32>
    %c0_24 = arith.constant 0 : index
    %c0_25 = arith.constant 0 : index
    %40 = vector.load %arg14[%c0_24, %c0_25] : memref<8x16xf32, #tpu.memory_space<vmem>>, vector<8x16xf32>
    tpu.vector_store %arg14[%c0_24, %c0_25], %39 {strides = array<i32>} : memref<8x16xf32, #tpu.memory_space<vmem>>, vector<8x16xf32>,
    %c8_i32 = arith.constant 8 : i32
    %41 = arith.muli %arg0, %c8_i32 : i32
    %42 = tpu.iota {dimensions = array<i32: 0>} : vector<8x1xi32>
    %43 = vector.broadcast %41 : i32 to vector<8x1xi32>
    %44 = arith.addi %43, %42 : vector<8x1xi32>
    %c8_i32_26 = arith.constant 8 : i32
    %45 = vector.broadcast %c8_i32_26 : i32 to vector<8x1xi32>
    %46 = arith.cmpi slt, %44, %45 : vector<8x1xi32>
    %47 = arith.extui %46 : vector<8x1xi1> to vector<8x1xi32>
    %48 = arith.sitofp %47 : vector<8x1xi32> to vector<8x1xf32>
    %49 = arith.subf %38, %16 : vector<8x128xf32>
    %50 = vector.broadcast %48 : vector<8x1xf32> to vector<8x128xf32>
    %51 = arith.mulf %49, %50 : vector<8x128xf32>
    %52 = arith.mulf %51, %51 : vector<8x128xf32>
    %53 = vector.shape_cast %52 : vector<8x128xf32> to vector<1x8x128xf32>
    %cst_27 = arith.constant dense<0.000000e+00> : vector<1xf32>
    %54 = vector.multi_reduction <add>, %53, %cst_27 [1, 2] : vector<1x8x128xf32> to vector<1xf32>
    %55 = vector.shape_cast %54 : vector<1xf32> to vector<1x1x1xf32>
    %56 = vector.extract %55[0, 0, 0] : f32 from vector<1x1x1xf32>
    %57 = vector.broadcast %56 : f32 to vector<1x8x128xf32>
    %c0_28 = arith.constant 0 : index
    %c0_29 = arith.constant 0 : index
    %c0_30 = arith.constant 0 : index
    %58 = vector.load %arg16[%c0_28, %c0_29, %c0_30] : memref<1x8x128xf32, #tpu.memory_space<vmem>>, vector<1x8x128xf32>
    tpu.vector_store %arg16[%c0_28, %c0_29, %c0_30], %57 {strides = array<i32>} : memref<1x8x128xf32, #tpu.memory_space<vmem>>, vector<1x8x128xf32>,
    %59 = arith.truncf %38 : vector<8x128xf32> to vector<8x128xbf16>
    %c0_31 = arith.constant 0 : index
    %c0_32 = arith.constant 0 : index
    %60 = vector.load %arg9[%c0_31, %c0_32] : memref<128x128xbf16, #tpu.memory_space<vmem>>, vector<128x128xbf16>
    %cst_33 = arith.constant dense<0.000000e+00> : vector<8x128xf32>
    %61 = tpu.matmul %59, %60, %cst_33 {dimension_numbers = #tpu.dot_dimension_numbers<[1], [0], [0], [1], [0, 0, 1, 1], [], []>} : vector<8x128xbf16>, vector<128x128xbf16>, vector<8x128xf32> -> vector<8x128xf32>
    %c0_34 = arith.constant 0 : index
    %c0_35 = arith.constant 0 : index
    %62 = vector.load %arg10[%c0_34, %c0_35] : memref<1x128xf32, #tpu.memory_space<vmem>>, vector<1x128xf32>
    %63 = vector.broadcast %62 : vector<1x128xf32> to vector<8x128xf32>
    %64 = arith.addf %61, %63 : vector<8x128xf32>
    %cst_36 = arith.constant 0.000000e+00 : f32
    %65 = vector.broadcast %cst_36 : f32 to vector<8x128xf32>
    %66 = arith.maximumf %64, %65 : vector<8x128xf32>
    %67 = arith.truncf %66 : vector<8x128xf32> to vector<8x128xbf16>
    %c0_37 = arith.constant 0 : index
    %c0_38 = arith.constant 0 : index
    %68 = vector.load %arg11[%c0_37, %c0_38] : memref<128x128xbf16, #tpu.memory_space<vmem>>, vector<128x128xbf16>
    %cst_39 = arith.constant dense<0.000000e+00> : vector<8x128xf32>
    %69 = tpu.matmul %67, %68, %cst_39 {dimension_numbers = #tpu.dot_dimension_numbers<[1], [0], [0], [1], [0, 0, 1, 1], [], []>} : vector<8x128xbf16>, vector<128x128xbf16>, vector<8x128xf32> -> vector<8x128xf32>
    %c0_40 = arith.constant 0 : index
    %c0_41 = arith.constant 0 : index
    %70 = vector.load %arg12[%c0_40, %c0_41] : memref<1x128xf32, #tpu.memory_space<vmem>>, vector<1x128xf32>
    %71 = vector.broadcast %70 : vector<1x128xf32> to vector<8x128xf32>
    %72 = arith.addf %69, %71 : vector<8x128xf32>
    %73 = vector.extract_strided_slice %72 {offsets = [0, 0], sizes = [8, 32], strides = [1, 1]} : vector<8x128xf32> to vector<8x32xf32>
    %74 = arith.negf %73 : vector<8x32xf32>
    %75 = math.exp %74 : vector<8x32xf32>
    %cst_42 = arith.constant 1.000000e+00 : f32
    %76 = vector.broadcast %cst_42 : f32 to vector<8x32xf32>
    %77 = arith.addf %76, %75 : vector<8x32xf32>
    %78 = arith.divf %76, %77 : vector<8x32xf32>
    %c0_43 = arith.constant 0 : index
    %c0_44 = arith.constant 0 : index
    %79 = vector.load %arg15[%c0_43, %c0_44] : memref<8x32xf32, #tpu.memory_space<vmem>>, vector<8x32xf32>
    tpu.vector_store %arg15[%c0_43, %c0_44], %78 {strides = array<i32>} : memref<8x32xf32, #tpu.memory_space<vmem>>, vector<8x32xf32>,
    return
  }
  func.func @transform_0(%arg0: i32) -> (i32, i32) {
    %c0_i32 = arith.constant 0 : i32
    %c0_i32_0 = arith.constant 0 : i32
    return %arg0, %c0_i32 : i32, i32
  }
  func.func @transform_1(%arg0: i32) -> (i32, i32) {
    %c0_i32 = arith.constant 0 : i32
    %c0_i32_0 = arith.constant 0 : i32
    %c0_i32_1 = arith.constant 0 : i32
    return %c0_i32, %c0_i32_0 : i32, i32
  }
  func.func @transform_2(%arg0: i32) -> (i32, i32) {
    %c0_i32 = arith.constant 0 : i32
    %c0_i32_0 = arith.constant 0 : i32
    %c0_i32_1 = arith.constant 0 : i32
    return %c0_i32, %c0_i32_0 : i32, i32
  }
  func.func @transform_3(%arg0: i32) -> (i32, i32) {
    %c0_i32 = arith.constant 0 : i32
    %c0_i32_0 = arith.constant 0 : i32
    %c0_i32_1 = arith.constant 0 : i32
    return %c0_i32, %c0_i32_0 : i32, i32
  }
  func.func @transform_4(%arg0: i32) -> (i32, i32) {
    %c0_i32 = arith.constant 0 : i32
    %c0_i32_0 = arith.constant 0 : i32
    %c0_i32_1 = arith.constant 0 : i32
    return %c0_i32, %c0_i32_0 : i32, i32
  }
  func.func @transform_5(%arg0: i32) -> (i32, i32) {
    %c0_i32 = arith.constant 0 : i32
    %c0_i32_0 = arith.constant 0 : i32
    %c0_i32_1 = arith.constant 0 : i32
    return %c0_i32, %c0_i32_0 : i32, i32
  }
  func.func @transform_6(%arg0: i32) -> (i32, i32) {
    %c0_i32 = arith.constant 0 : i32
    %c0_i32_0 = arith.constant 0 : i32
    %c0_i32_1 = arith.constant 0 : i32
    return %c0_i32, %c0_i32_0 : i32, i32
  }
  func.func @transform_7(%arg0: i32) -> (i32, i32) {
    %c0_i32 = arith.constant 0 : i32
    %c0_i32_0 = arith.constant 0 : i32
    %c0_i32_1 = arith.constant 0 : i32
    return %c0_i32, %c0_i32_0 : i32, i32
  }
  func.func @transform_8(%arg0: i32) -> (i32, i32) {
    %c0_i32 = arith.constant 0 : i32
    %c0_i32_0 = arith.constant 0 : i32
    %c0_i32_1 = arith.constant 0 : i32
    return %c0_i32, %c0_i32_0 : i32, i32
  }
  func.func @transform_9(%arg0: i32) -> (i32, i32) {
    %c0_i32 = arith.constant 0 : i32
    %c0_i32_0 = arith.constant 0 : i32
    %c0_i32_1 = arith.constant 0 : i32
    return %c0_i32, %c0_i32_0 : i32, i32
  }
  func.func @transform_10(%arg0: i32) -> (i32, i32) {
    %c0_i32 = arith.constant 0 : i32
    %c0_i32_0 = arith.constant 0 : i32
    %c0_i32_1 = arith.constant 0 : i32
    return %c0_i32, %c0_i32_0 : i32, i32
  }
  func.func @transform_11(%arg0: i32) -> (i32, i32) {
    %c0_i32 = arith.constant 0 : i32
    %c0_i32_0 = arith.constant 0 : i32
    %c0_i32_1 = arith.constant 0 : i32
    return %c0_i32, %c0_i32_0 : i32, i32
  }
  func.func @transform_12(%arg0: i32) -> (i32, i32) {
    %c0_i32 = arith.constant 0 : i32
    %c0_i32_0 = arith.constant 0 : i32
    return %arg0, %c0_i32 : i32, i32
  }
  func.func @transform_13(%arg0: i32) -> (i32, i32) {
    %c0_i32 = arith.constant 0 : i32
    %c0_i32_0 = arith.constant 0 : i32
    return %arg0, %c0_i32 : i32, i32
  }
  func.func @transform_14(%arg0: i32) -> (i32, i32) {
    %c0_i32 = arith.constant 0 : i32
    %c0_i32_0 = arith.constant 0 : i32
    return %arg0, %c0_i32 : i32, i32
  }
  func.func @transform_15(%arg0: i32) -> (i32, i32, i32) {
    %c0_i32 = arith.constant 0 : i32
    %c0_i32_0 = arith.constant 0 : i32
    %c0_i32_1 = arith.constant 0 : i32
    return %arg0, %c0_i32, %c0_i32_0 : i32, i32, i32
  }
}

</mosaic_0001>

<llo_original>
// kernel: vqvae_forward.1
$region0: #{vqvae_forward.1}
  #allocation0 [shape = 'u32[]', space=smem, size = 0x4, offset = 0x4, fixed_abs, tag = 'smem constant byte address 0x4 - core index']
  #allocation1 [shape = 'u32[72,128]{1,0:T(1,128)}', space=vmem, size = 0x9000, scoped, tag = 'internal scratch']
  %s0 = inlined_call_operand.hbm [shape: f32[8,32], index: 0, kind: input, shape index: {}]
  %s1 = inlined_call_operand.hbm [shape: bf16[32,128], index: 1, kind: input, shape index: {}]
  %s2 = inlined_call_operand.hbm [shape: f32[1,128], index: 2, kind: input, shape index: {}]
  %s3 = inlined_call_operand.vmem [shape: bf16[128,128], index: 3, kind: input, shape index: {}]
  %s4 = inlined_call_operand.vmem [shape: f32[1,128], index: 4, kind: input, shape index: {}]
  %s5 = inlined_call_operand.vmem [shape: f32[32,128], index: 5, kind: input, shape index: {}]
  %s6 = inlined_call_operand.vmem [shape: f32[128,32], index: 6, kind: input, shape index: {}]
  %s7 = inlined_call_operand.vmem [shape: f32[1,32], index: 7, kind: input, shape index: {}]
  %s8 = inlined_call_operand.vmem [shape: bf16[128,128], index: 8, kind: input, shape index: {}]
  %s9 = inlined_call_operand.hbm [shape: f32[1,128], index: 9, kind: input, shape index: {}]
  %s10 = inlined_call_operand.hbm [shape: bf16[128,128], index: 10, kind: input, shape index: {}]
  %s11 = inlined_call_operand.vmem [shape: f32[1,128], index: 11, kind: input, shape index: {}]
  %s12 = inlined_call_operand.hbm [shape: f32[8,16], index: 12, kind: output, shape index: {0}]
  %s13 = inlined_call_operand.hbm [shape: f32[8,16], index: 13, kind: output, shape index: {1}]
  %s14 = inlined_call_operand.hbm [shape: f32[8,32], index: 14, kind: output, shape index: {2}]
  %s15 = inlined_call_operand.vmem [shape: f32[1,8,128], index: 15, kind: output, shape index: {3}]
  %16 = xla_tuple %s12, %s13, %s14, %s15
  %s17 = sld [smem:[#allocation0]]
  $region102: #{vqvae_forward.1} parent=0
    _
  %s19 = ssub.s32 1, %s17
  %s20 = scalar_select 0, %s19, %s17
  $region1: #{vqvae_forward.1} parent=0
    #allocation2 [shape = 'u8[4096]{0}', space=vmem, size = 0x1000, scoped, tag = 'input window, operand 0, single buffered']
    #allocation3 [shape = 's32[1]{0}', space=sflag, size = 0x4, scoped, tag = 'scoped memory for vqvae_forward.1']
    #allocation4 [shape = 's32[1]{0}', space=sflag, size = 0x4, scoped, tag = 'scoped memory for vqvae_forward.1']
    #allocation5 [shape = 'u8[8192]{0}', space=vmem, size = 0x2000, scoped, tag = 'input window, operand 1, single buffered']
    #allocation6 [shape = 's32[1]{0}', space=sflag, size = 0x4, scoped, tag = 'scoped memory for vqvae_forward.1']
    #allocation7 [shape = 'u8[512]{0}', space=vmem, size = 0x400, scoped, tag = 'input window, operand 2, single buffered']
    #allocation8 [shape = 'u8[512]{0}', space=vmem, size = 0x400, scoped, tag = 'input window, operand 9, single buffered']
    #allocation9 [shape = 's32[1]{0}', space=sflag, size = 0x4, scoped, tag = 'scoped memory for vqvae_forward.1']
    #allocation10 [shape = 'u8[32768]{0}', space=vmem, size = 0x8000, scoped, tag = 'input window, operand 10, single buffered']
    #allocation11 [shape = 'u8[4096]{0}', space=vmem, size = 0x1000, scoped, tag = 'output window, operand 0, single buffered']
    #allocation12 [shape = 'u8[4096]{0}', space=vmem, size = 0x1000, scoped, tag = 'output window, operand 1, single buffered']
    #allocation13 [shape = 's32[1]{0}', space=sflag, size = 0x4, scoped, tag = 'scoped memory for vqvae_forward.1']
    #allocation14 [shape = 'u8[4096]{0}', space=vmem, size = 0x1000, scoped, tag = 'output window, operand 2, single buffered']
    %21 = vsyncpa [#allocation3], 0
    %22 = vsyncpa [#allocation6], 0
    %23 = vsyncpa [#allocation9], 0
    %24 = vsyncpa [#allocation4], 0
    %25 = vsyncpa [#allocation13], 0
    // Predicated region
    $region2: #{vqvae_forward.1} parent=1 // pred_check
      _
    $region3: #{vqvae_forward.1} parent=1 // pred_check_branch
      %27 = sbr.rel (0) target = $region5
    $region4: #{vqvae_forward.1} parent=1 // pred_region
      %29 = vsyncadd [#allocation3], 0
      %s31 = sshll.u32 %s0, 4
      %s32 = int_to_ptr.hbm [resolvable:$true] %s31
      %s33 = sshll.u32 [#allocation2], 4
      %s34 = int_to_ptr.vmem [resolvable:$true] %s33
      %36 = dma.hbm_to_vmem [thread:$0]  %s32, 128, %s34, [#allocation3]
    $region5: #{vqvae_forward.1} parent=1 // pred_fallthru
      _
    // Predicated region
    $region6: #{vqvae_forward.1} parent=1 // pred_check
      _
    $region7: #{vqvae_forward.1} parent=1 // pred_check_branch
      %38 = sbr.rel (0) target = $region9
    $region8: #{vqvae_forward.1} parent=1 // pred_region
      %40 = vsyncadd [#allocation6], 0
      %s41 = sshll.u32 %s1, 4
      %s42 = int_to_ptr.hbm [resolvable:$true] %s41
      %s43 = sshll.u32 [#allocation5], 4
      %s44 = int_to_ptr.vmem [resolvable:$true] %s43
      %49 = dma.hbm_to_vmem [thread:$0]  %s42, 256, %s44, [#allocation6], 64, 64, 4
    $region9: #{vqvae_forward.1} parent=1 // pred_fallthru
      _
    // Predicated region
    $region10: #{vqvae_forward.1} parent=1 // pred_check
      _
    $region11: #{vqvae_forward.1} parent=1 // pred_check_branch
      %51 = sbr.rel (0) target = $region13
    $region12: #{vqvae_forward.1} parent=1 // pred_region
      %53 = vsyncadd [#allocation6], 0
      %s55 = sshll.u32 %s2, 4
      %s56 = int_to_ptr.hbm [resolvable:$true] %s55
      %s57 = sshll.u32 [#allocation7], 4
      %s58 = int_to_ptr.vmem [resolvable:$true] %s57
      %60 = dma.hbm_to_vmem [thread:$0]  %s56, 16, %s58, [#allocation6]
    $region13: #{vqvae_forward.1} parent=1 // pred_fallthru
      _
    // Predicated region
    $region14: #{vqvae_forward.1} parent=1 // pred_check
      _
    $region15: #{vqvae_forward.1} parent=1 // pred_check_branch
      %62 = sbr.rel (0) target = $region17
    $region16: #{vqvae_forward.1} parent=1 // pred_region
      _
    $region17: #{vqvae_forward.1} parent=1 // pred_fallthru
      _
    // Predicated region
    $region18: #{vqvae_forward.1} parent=1 // pred_check
      _
    $region19: #{vqvae_forward.1} parent=1 // pred_check_branch
      %64 = sbr.rel (0) target = $region21
    $region20: #{vqvae_forward.1} parent=1 // pred_region
      _
    $region21: #{vqvae_forward.1} parent=1 // pred_fallthru
      _
    // Predicated region
    $region22: #{vqvae_forward.1} parent=1 // pred_check
      _
    $region23: #{vqvae_forward.1} parent=1 // pred_check_branch
      %66 = sbr.rel (0) target = $region25
    $region24: #{vqvae_forward.1} parent=1 // pred_region
      _
    $region25: #{vqvae_forward.1} parent=1 // pred_fallthru
      _
    // Predicated region
    $region26: #{vqvae_forward.1} parent=1 // pred_check
      _
    $region27: #{vqvae_forward.1} parent=1 // pred_check_branch
      %68 = sbr.rel (0) target = $region29
    $region28: #{vqvae_forward.1} parent=1 // pred_region
      _
    $region29: #{vqvae_forward.1} parent=1 // pred_fallthru
      _
    // Predicated region
    $region30: #{vqvae_forward.1} parent=1 // pred_check
      _
    $region31: #{vqvae_forward.1} parent=1 // pred_check_branch
      %70 = sbr.rel (0) target = $region33
    $region32: #{vqvae_forward.1} parent=1 // pred_region
      _
    $region33: #{vqvae_forward.1} parent=1 // pred_fallthru
      _
    // Predicated region
    $region34: #{vqvae_forward.1} parent=1 // pred_check
      _
    $region35: #{vqvae_forward.1} parent=1 // pred_check_branch
      %72 = sbr.rel (0) target = $region37
    $region36: #{vqvae_forward.1} parent=1 // pred_region
      _
    $region37: #{vqvae_forward.1} parent=1 // pred_fallthru
      _
    // Predicated region
    $region38: #{vqvae_forward.1} parent=1 // pred_check
      _
    $region39: #{vqvae_forward.1} parent=1 // pred_check_branch
      %74 = sbr.rel (0) target = $region41
    $region40: #{vqvae_forward.1} parent=1 // pred_region
      %76 = vsyncadd [#allocation9], 0
      %s78 = sshll.u32 %s9, 4
      %s79 = int_to_ptr.hbm [resolvable:$true] %s78
      %s80 = sshll.u32 [#allocation8], 4
      %s81 = int_to_ptr.vmem [resolvable:$true] %s80
      %83 = dma.hbm_to_vmem [thread:$0]  %s79, 16, %s81, [#allocation9]
    $region41: #{vqvae_forward.1} parent=1 // pred_fallthru
      _
    // Predicated region
    $region42: #{vqvae_forward.1} parent=1 // pred_check
      _
    $region43: #{vqvae_forward.1} parent=1 // pred_check_branch
      %85 = sbr.rel (0) target = $region45
    $region44: #{vqvae_forward.1} parent=1 // pred_region
      %87 = vsyncadd [#allocation9], 0
      %s88 = sshll.u32 %s10, 4
      %s89 = int_to_ptr.hbm [resolvable:$true] %s88
      %s90 = sshll.u32 [#allocation10], 4
      %s91 = int_to_ptr.vmem [resolvable:$true] %s90
      %96 = dma.hbm_to_vmem [thread:$0]  %s89, 1024, %s91, [#allocation9], 64, 64, 4
    $region45: #{vqvae_forward.1} parent=1 // pred_fallthru
      _
    // Predicated region
    $region46: #{vqvae_forward.1} parent=1 // pred_check
      _
    $region47: #{vqvae_forward.1} parent=1 // pred_check_branch
      %98 = sbr.rel (0) target = $region49
    $region48: #{vqvae_forward.1} parent=1 // pred_region
      _
    $region49: #{vqvae_forward.1} parent=1 // pred_fallthru
      _
    // Predicated region
    $region50: #{vqvae_forward.1} parent=1 // pred_check
      _
    $region51: #{vqvae_forward.1} parent=1 // pred_check_branch
      %100 = sbr.rel (0) target = $region53
    $region52: #{vqvae_forward.1} parent=1 // pred_region
      %102 = dma.done [#allocation3], 128
    $region53: #{vqvae_forward.1} parent=1 // pred_fallthru
      _
    // Predicated region
    $region54: #{vqvae_forward.1} parent=1 // pred_check
      _
    $region55: #{vqvae_forward.1} parent=1 // pred_check_branch
      %104 = sbr.rel (0) target = $region57
    $region56: #{vqvae_forward.1} parent=1 // pred_region
      %106 = dma.done [#allocation6], 256
    $region57: #{vqvae_forward.1} parent=1 // pred_fallthru
      _
    // Predicated region
    $region58: #{vqvae_forward.1} parent=1 // pred_check
      _
    $region59: #{vqvae_forward.1} parent=1 // pred_check_branch
      %108 = sbr.rel (0) target = $region61
    $region60: #{vqvae_forward.1} parent=1 // pred_region
      %110 = dma.done [#allocation6], 16
    $region61: #{vqvae_forward.1} parent=1 // pred_fallthru
      _
    // Predicated region
    $region62: #{vqvae_forward.1} parent=1 // pred_check
      _
    $region63: #{vqvae_forward.1} parent=1 // pred_check_branch
      %112 = sbr.rel (0) target = $region65
    $region64: #{vqvae_forward.1} parent=1 // pred_region
      %114 = dma.done [#allocation9], 16
    $region65: #{vqvae_forward.1} parent=1 // pred_fallthru
      _
    // Predicated region
    $region66: #{vqvae_forward.1} parent=1 // pred_check
      _
    $region67: #{vqvae_forward.1} parent=1 // pred_check_branch
      %116 = sbr.rel (0) target = $region69
    $region68: #{vqvae_forward.1} parent=1 // pred_region
      %118 = dma.done [#allocation9], 1024
    $region69: #{vqvae_forward.1} parent=1 // pred_fallthru
      _
    %v120 = vld [vmem:[#allocation2] sm:$0xff]
    %v121 = vpack.c.bf16 %v120, %v120
    %v122 = vld [vmem:[#allocation5] sm:$0xf]
    %v123 = vld [vmem:[#allocation5 + $0x4] sm:$0xf]
    %v124 = vld [vmem:[#allocation5 + $0x8] sm:$0xf]
    %v125 = vld [vmem:[#allocation5 + $0xc] sm:$0xf]
    %v126 = vld [vmem:[#allocation7] sm:$0x1]
    %v128 = vperm.slane %v126, 0
    %v134 = vunpack.c.l.b16 %v122
    %v135 = vunpack.c.l.b16 %v123
    %v136 = vunpack.c.l.b16 %v124
    %v137 = vunpack.c.l.b16 %v125
    %v138 = vpack.c.b16 %v135, %v134
    %v139 = vpack.c.b16 %v137, %v136
    %vm142 = vcmask 261120
    %v144 = vsel %vm142, %v121, 0
    %146 = vmatpush.bf16.msra.mxu0 0
    %147 = vmatpush.bf16.msra.mxu0 0
    %148 = vmatpush.bf16.msra.mxu0 0
    %149 = vmatpush.bf16.msra.mxu0 0
    %150 = vmatpush.bf16.msra.mxu0 0
    %151 = vmatpush.bf16.msra.mxu0 0
    %152 = vmatpush.bf16.msra.mxu0 %v139
    %153 = vmatpush.bf16.msra.mxu0 %v138
    %154 = vmatmul.bf16.gmra.mxu0 %v144
    %v155 = vpop.f32.mrf.mxu0
    %v156 = vadd.f32 %v128, %v155
    %v157 = vpop.f32.mrf.mxu0
    %158 = vdwg.mxu0
    %v159 = vmax.f32 %v156, 0.0
    %v160 = vpack.c.bf16 %v159, %v159
    %v161 = vld [vmem:[%s3] sm:$0xf]
    %v162 = vld [vmem:[%s3 + $0x4] sm:$0xf]
    %v163 = vld [vmem:[%s3 + $0x8] sm:$0xf]
    %v164 = vld [vmem:[%s3 + $0xc] sm:$0xf]
    %v165 = vld [vmem:[%s3 + $0x10] sm:$0xf]
    %v166 = vld [vmem:[%s3 + $0x14] sm:$0xf]
    %v167 = vld [vmem:[%s3 + $0x18] sm:$0xf]
    %v168 = vld [vmem:[%s3 + $0x1c] sm:$0xf]
    %v169 = vld [vmem:[%s3 + $0x20] sm:$0xf]
    %v170 = vld [vmem:[%s3 + $0x24] sm:$0xf]
    %v171 = vld [vmem:[%s3 + $0x28] sm:$0xf]
    %v172 = vld [vmem:[%s3 + $0x2c] sm:$0xf]
    %v173 = vld [vmem:[%s3 + $0x30] sm:$0xf]
    %v174 = vld [vmem:[%s3 + $0x34] sm:$0xf]
    %v175 = vld [vmem:[%s3 + $0x38] sm:$0xf]
    %v176 = vld [vmem:[%s3 + $0x3c] sm:$0xf]
    %v177 = vld [vmem:[%s4] sm:$0x1]
    %v179 = vperm.slane %v177, 0
    %v197 = vunpack.c.l.b16 %v161
    %v198 = vunpack.c.l.b16 %v162
    %v199 = vunpack.c.l.b16 %v163
    %v200 = vunpack.c.l.b16 %v164
    %v201 = vunpack.c.l.b16 %v165
    %v202 = vunpack.c.l.b16 %v166
    %v203 = vunpack.c.l.b16 %v167
    %v204 = vunpack.c.l.b16 %v168
    %v205 = vunpack.c.l.b16 %v169
    %v206 = vunpack.c.l.b16 %v170
    %v207 = vunpack.c.l.b16 %v171
    %v208 = vunpack.c.l.b16 %v172
    %v209 = vunpack.c.l.b16 %v173
    %v210 = vunpack.c.l.b16 %v174
    %v211 = vunpack.c.l.b16 %v175
    %v212 = vunpack.c.l.b16 %v176
    %v213 = vpack.c.b16 %v198, %v197
    %v214 = vpack.c.b16 %v200, %v199
    %v215 = vpack.c.b16 %v202, %v201
    %v216 = vpack.c.b16 %v204, %v203
    %v217 = vpack.c.b16 %v206, %v205
    %v218 = vpack.c.b16 %v208, %v207
    %v219 = vpack.c.b16 %v210, %v209
    %v220 = vpack.c.b16 %v212, %v211
    %229 = vmatpush.bf16.msra.mxu0 %v220
    %230 = vmatpush.bf16.msra.mxu0 %v219
    %231 = vmatpush.bf16.msra.mxu0 %v218
    %232 = vmatpush.bf16.msra.mxu0 %v217
    %233 = vmatpush.bf16.msra.mxu0 %v216
    %234 = vmatpush.bf16.msra.mxu0 %v215
    %235 = vmatpush.bf16.msra.mxu0 %v214
    %236 = vmatpush.bf16.msra.mxu0 %v213
    %237 = vmatmul.bf16.gmra.mxu0 %v160
    %v238 = vpop.f32.mrf.mxu0
    %v239 = vadd.f32 %v179, %v238
    %v240 = vpop.f32.mrf.mxu0
    %241 = vdwg.mxu0
    %v242 = vmax.f32 %v239, 0.0
    %vm243 = vcmask 130048
    %244 = vst.msk [vmem:[#allocation11] sm:$0xff] %vm243, %v242
    %v245 = vld [vmem:[%s6] sm:$0xff]
    %v246 = vld [vmem:[%s6 + $0x8] sm:$0xff]
    %v247 = vld [vmem:[%s6 + $0x10] sm:$0xff]
    %v248 = vld [vmem:[%s6 + $0x18] sm:$0xff]
    %v249 = vld [vmem:[%s6 + $0x20] sm:$0xff]
    %v250 = vld [vmem:[%s6 + $0x28] sm:$0xff]
    %v251 = vld [vmem:[%s6 + $0x30] sm:$0xff]
    %v252 = vld [vmem:[%s6 + $0x38] sm:$0xff]
    %v253 = vld [vmem:[%s6 + $0x40] sm:$0xff]
    %v254 = vld [vmem:[%s6 + $0x48] sm:$0xff]
    %v255 = vld [vmem:[%s6 + $0x50] sm:$0xff]
    %v256 = vld [vmem:[%s6 + $0x58] sm:$0xff]
    %v257 = vld [vmem:[%s6 + $0x60] sm:$0xff]
    %v258 = vld [vmem:[%s6 + $0x68] sm:$0xff]
    %v259 = vld [vmem:[%s6 + $0x70] sm:$0xff]
    %v260 = vld [vmem:[%s6 + $0x78] sm:$0xff]
    %261 = vmatpush.msra.mxu0 %v260
    %262 = vmatpush.msra.mxu0 %v259
    %263 = vmatpush.msra.mxu0 %v258
    %264 = vmatpush.msra.mxu0 %v257
    %265 = vmatpush.msra.mxu0 %v256
    %266 = vmatpush.msra.mxu0 %v255
    %267 = vmatpush.msra.mxu0 %v254
    %268 = vmatpush.msra.mxu0 %v253
    %269 = vmatpush.msra.mxu0 %v252
    %270 = vmatpush.msra.mxu0 %v251
    %271 = vmatpush.msra.mxu0 %v250
    %272 = vmatpush.msra.mxu0 %v249
    %273 = vmatpush.msra.mxu0 %v248
    %274 = vmatpush.msra.mxu0 %v247
    %275 = vmatpush.msra.mxu0 %v246
    %276 = vmatpush.msra.mxu0 %v245
    %277 = vmatmul.f32.gmra.mxu0 %v242
    %v278 = vpop.f32.mrf.mxu0
    %v279 = vadd.f32 0.0, %v278
    %280 = vdwg.mxu0
    %v281 = vld [vmem:[%s7] sm:$0x1]
    %v283 = vperm.slane %v281, 0
    %v285 = vadd.f32 %v283, %v279
    %v286 = vlaneseq
    %v287 = vand.u32 %v286, 127
    %v288 = vsel %vm142, %v285, inf
    %289 = vmin.xlane.f32.xlu0 %v288
    %v290 = vpop.xlane.xlu0 %289
    %vm291 = vcmp.le.f32.partialorder %v285, %v290
    %v292 = vsel %vm291, %v287, 32
    %v293 = vsel %vm142, %v292, 2147483647
    %v294 = vand.u32 %v293, 65535
    %v295 = vshra.s32 %v293, 16
    %v296 = vcvt.s32.f32 %v294
    %v297 = vcvt.s32.f32 %v295
    %298 = vmin.xlane.f32.xlu0 %v297
    %v299 = vpop.xlane.xlu0 %298
    %vm300 = vcmp.eq.f32.partialorder %v297, %v299
    %v301 = vsel %vm300, %v296, inf
    %302 = vmin.xlane.f32.xlu0 %v301
    %v303 = vpop.xlane.xlu0 %302
    %v304 = vcvt.f32.s32 %v303
    %v305 = vcvt.f32.s32 %v299
    %v306 = vshll.u32 %v305, 16
    %v307 = vadd.s32 %v306, %v304
    %vm308 = vcmp.eq.s32.totalorder %v287, %v307
    %v309 = vsel %vm308, 1, 0
    %v310 = vcvt.s32.f32 %v309
    %v311 = vld [vmem:[%s5] sm:$0xff]
    %v312 = vld [vmem:[%s5 + $0x8] sm:$0xff]
    %v313 = vld [vmem:[%s5 + $0x10] sm:$0xff]
    %v314 = vld [vmem:[%s5 + $0x18] sm:$0xff]
    %v316 = vsel %vm142, %v310, 0
    %318 = vmatpush.msra.mxu0 0.0
    %319 = vmatpush.msra.mxu0 0.0
    %320 = vmatpush.msra.mxu0 0.0
    %321 = vmatpush.msra.mxu0 0.0
    %322 = vmatpush.msra.mxu0 0.0
    %323 = vmatpush.msra.mxu0 0.0
    %324 = vmatpush.msra.mxu0 0.0
    %325 = vmatpush.msra.mxu0 0.0
    %326 = vmatpush.msra.mxu0 0.0
    %327 = vmatpush.msra.mxu0 0.0
    %328 = vmatpush.msra.mxu0 0.0
    %329 = vmatpush.msra.mxu0 0.0
    %330 = vmatpush.msra.mxu0 %v314
    %331 = vmatpush.msra.mxu0 %v313
    %332 = vmatpush.msra.mxu0 %v312
    %333 = vmatpush.msra.mxu0 %v311
    %334 = vmatmul.f32.gmra.mxu0 %v316
    %v335 = vpop.f32.mrf.mxu0
    %v336 = vadd.f32 0.0, %v335
    %337 = vdwg.mxu0
    %338 = vst.msk [vmem:[#allocation12] sm:$0xff] %vm243, %v336
    %s339 = smul.u32 0, 8
    %v340 = vlaneseq
    %v341 = vshrl.u32 %v340, 7
    %v342 = vstv %s339
    %v343 = vadd.s32 %v342, %v341
    %vm344 = vcmp.lt.s32.totalorder %v343, 8
    %v345 = vsel %vm344, 1, 0
    %v346 = vcvt.s32.f32 %v345
    %v347 = vsub.f32 %v336, %v242
    %v348 = vmul.f32 %v347, %v346
    %v349 = vmul.f32 %v348, %v348
    %350 = vadd.xlane.f32.xlu0 %v349
    %v351 = vpop.xlane.xlu0 %350
    %v352 = vrot.slane %v351, 4
    %v353 = vadd.f32 %v351, %v352
    %v354 = vrot.slane %v353, 2
    %v355 = vadd.f32 %v353, %v354
    %v356 = vrot.slane %v355, 1
    %v357 = vadd.f32 %v355, %v356
    %s358 = vtos %v357
    %v359 = vstv %s358
    %360 = vst [vmem:[%s15] sm:$0xff] %v359
    %v361 = vpack.c.bf16 %v336, %v336
    %v362 = vld [vmem:[%s8] sm:$0xf]
    %v363 = vld [vmem:[%s8 + $0x4] sm:$0xf]
    %v364 = vld [vmem:[%s8 + $0x8] sm:$0xf]
    %v365 = vld [vmem:[%s8 + $0xc] sm:$0xf]
    %v366 = vld [vmem:[%s8 + $0x10] sm:$0xf]
    %v367 = vld [vmem:[%s8 + $0x14] sm:$0xf]
    %v368 = vld [vmem:[%s8 + $0x18] sm:$0xf]
    %v369 = vld [vmem:[%s8 + $0x1c] sm:$0xf]
    %v370 = vld [vmem:[%s8 + $0x20] sm:$0xf]
    %v371 = vld [vmem:[%s8 + $0x24] sm:$0xf]
    %v372 = vld [vmem:[%s8 + $0x28] sm:$0xf]
    %v373 = vld [vmem:[%s8 + $0x2c] sm:$0xf]
    %v374 = vld [vmem:[%s8 + $0x30] sm:$0xf]
    %v375 = vld [vmem:[%s8 + $0x34] sm:$0xf]
    %v376 = vld [vmem:[%s8 + $0x38] sm:$0xf]
    %v377 = vld [vmem:[%s8 + $0x3c] sm:$0xf]
    %v378 = vld [vmem:[#allocation8] sm:$0x1]
    %v380 = vperm.slane %v378, 0
    %v398 = vunpack.c.l.b16 %v362
    %v399 = vunpack.c.l.b16 %v363
    %v400 = vunpack.c.l.b16 %v364
    %v401 = vunpack.c.l.b16 %v365
    %v402 = vunpack.c.l.b16 %v366
    %v403 = vunpack.c.l.b16 %v367
    %v404 = vunpack.c.l.b16 %v368
    %v405 = vunpack.c.l.b16 %v369
    %v406 = vunpack.c.l.b16 %v370
    %v407 = vunpack.c.l.b16 %v371
    %v408 = vunpack.c.l.b16 %v372
    %v409 = vunpack.c.l.b16 %v373
    %v410 = vunpack.c.l.b16 %v374
    %v411 = vunpack.c.l.b16 %v375
    %v412 = vunpack.c.l.b16 %v376
    %v413 = vunpack.c.l.b16 %v377
    %v414 = vpack.c.b16 %v399, %v398
    %v415 = vpack.c.b16 %v401, %v400
    %v416 = vpack.c.b16 %v403, %v402
    %v417 = vpack.c.b16 %v405, %v404
    %v418 = vpack.c.b16 %v407, %v406
    %v419 = vpack.c.b16 %v409, %v408
    %v420 = vpack.c.b16 %v411, %v410
    %v421 = vpack.c.b16 %v413, %v412
    %430 = vmatpush.bf16.msra.mxu0 %v421
    %431 = vmatpush.bf16.msra.mxu0 %v420
    %432 = vmatpush.bf16.msra.mxu0 %v419
    %433 = vmatpush.bf16.msra.mxu0 %v418
    %434 = vmatpush.bf16.msra.mxu0 %v417
    %435 = vmatpush.bf16.msra.mxu0 %v416
    %436 = vmatpush.bf16.msra.mxu0 %v415
    %437 = vmatpush.bf16.msra.mxu0 %v414
    %438 = vmatmul.bf16.gmra.mxu0 %v361
    %v439 = vpop.f32.mrf.mxu0
    %v440 = vadd.f32 %v380, %v439
    %v441 = vpop.f32.mrf.mxu0
    %442 = vdwg.mxu0
    %v443 = vmax.f32 %v440, 0.0
    %v444 = vpack.c.bf16 %v443, %v443
    %v445 = vld [vmem:[#allocation10] sm:$0xf]
    %v446 = vld [vmem:[#allocation10 + $0x4] sm:$0xf]
    %v447 = vld [vmem:[#allocation10 + $0x8] sm:$0xf]
    %v448 = vld [vmem:[#allocation10 + $0xc] sm:$0xf]
    %v449 = vld [vmem:[#allocation10 + $0x10] sm:$0xf]
    %v450 = vld [vmem:[#allocation10 + $0x14] sm:$0xf]
    %v451 = vld [vmem:[#allocation10 + $0x18] sm:$0xf]
    %v452 = vld [vmem:[#allocation10 + $0x1c] sm:$0xf]
    %v453 = vld [vmem:[#allocation10 + $0x20] sm:$0xf]
    %v454 = vld [vmem:[#allocation10 + $0x24] sm:$0xf]
    %v455 = vld [vmem:[#allocation10 + $0x28] sm:$0xf]
    %v456 = vld [vmem:[#allocation10 + $0x2c] sm:$0xf]
    %v457 = vld [vmem:[#allocation10 + $0x30] sm:$0xf]
    %v458 = vld [vmem:[#allocation10 + $0x34] sm:$0xf]
    %v459 = vld [vmem:[#allocation10 + $0x38] sm:$0xf]
    %v460 = vld [vmem:[#allocation10 + $0x3c] sm:$0xf]
    %v461 = vld [vmem:[%s11] sm:$0x1]
    %v463 = vperm.slane %v461, 0
    %v481 = vunpack.c.l.b16 %v445
    %v482 = vunpack.c.l.b16 %v446
    %v483 = vunpack.c.l.b16 %v447
    %v484 = vunpack.c.l.b16 %v448
    %v485 = vunpack.c.l.b16 %v449
    %v486 = vunpack.c.l.b16 %v450
    %v487 = vunpack.c.l.b16 %v451
    %v488 = vunpack.c.l.b16 %v452
    %v489 = vunpack.c.l.b16 %v453
    %v490 = vunpack.c.l.b16 %v454
    %v491 = vunpack.c.l.b16 %v455
    %v492 = vunpack.c.l.b16 %v456
    %v493 = vunpack.c.l.b16 %v457
    %v494 = vunpack.c.l.b16 %v458
    %v495 = vunpack.c.l.b16 %v459
    %v496 = vunpack.c.l.b16 %v460
    %v497 = vpack.c.b16 %v482, %v481
    %v498 = vpack.c.b16 %v484, %v483
    %v499 = vpack.c.b16 %v486, %v485
    %v500 = vpack.c.b16 %v488, %v487
    %v501 = vpack.c.b16 %v490, %v489
    %v502 = vpack.c.b16 %v492, %v491
    %v503 = vpack.c.b16 %v494, %v493
    %v504 = vpack.c.b16 %v496, %v495
    %513 = vmatpush.bf16.msra.mxu0 %v504
    %514 = vmatpush.bf16.msra.mxu0 %v503
    %515 = vmatpush.bf16.msra.mxu0 %v502
    %516 = vmatpush.bf16.msra.mxu0 %v501
    %517 = vmatpush.bf16.msra.mxu0 %v500
    %518 = vmatpush.bf16.msra.mxu0 %v499
    %519 = vmatpush.bf16.msra.mxu0 %v498
    %520 = vmatpush.bf16.msra.mxu0 %v497
    %521 = vmatmul.bf16.gmra.mxu0 %v444
    %v522 = vpop.f32.mrf.mxu0
    %v523 = vadd.f32 %v463, %v522
    %v524 = vpop.f32.mrf.mxu0
    %525 = vdwg.mxu0
    %v526 = vxor.u32 %v523, 2147483648
    %v527 = vmul.f32 %v526, 1.442695
    %v528 = vpow.pop %v527
    %v529 = vadd.f32 %v528, 1.0
    %v530 = vrcp.pop %v529
    %v531 = vmul.f32 %v529, %v530
    %v532 = vsub.f32 1.0, %v531
    %v533 = vmul.f32 %v530, %v532
    %v534 = vadd.f32 %v530, %v533
    %vm535 = vweird.f32 %v529
    %vm536 = vweird.f32 %v530
    %vm537 = vmor %vm535, %vm536
    %v538 = vsel %vm537, %v530, %v534
    %v539 = vand.u32 2147483647, %v529
    %vm540 = vcmp.eq.f32.partialorder %v539, 8.507059e+37
    %v541 = vand.u32 %v529, 2147483648
    %v542 = vor.u32 1.1754944e-38, %v541
    %v543 = vsel %vm540, %v542, %v538
    %v544 = vmul.f32 1.0, %v543
    %545 = vst.msk [vmem:[#allocation14] sm:$0xff] %vm142, %v544
    // Predicated region
    $region70: #{vqvae_forward.1} parent=1 // pred_check
      _
    $region71: #{vqvae_forward.1} parent=1 // pred_check_branch
      %547 = sbr.rel (0) target = $region73
    $region72: #{vqvae_forward.1} parent=1 // pred_region
      %549 = vsyncadd [#allocation4], 0
      %s551 = sshll.u32 [#allocation11], 4
      %s552 = int_to_ptr.vmem [resolvable:$true] %s551
      %s553 = sshll.u32 %s12, 4
      %s554 = int_to_ptr.hbm [resolvable:$true] %s553
      %556 = dma.vmem_to_hbm [thread:$0]  %s552, 128, %s554, [#allocation4]
    $region73: #{vqvae_forward.1} parent=1 // pred_fallthru
      _
    // Predicated region
    $region74: #{vqvae_forward.1} parent=1 // pred_check
      _
    $region75: #{vqvae_forward.1} parent=1 // pred_check_branch
      %558 = sbr.rel (0) target = $region77
    $region76: #{vqvae_forward.1} parent=1 // pred_region
      %560 = vsyncadd [#allocation13], 0
      %s562 = sshll.u32 [#allocation12], 4
      %s563 = int_to_ptr.vmem [resolvable:$true] %s562
      %s564 = sshll.u32 %s13, 4
      %s565 = int_to_ptr.hbm [resolvable:$true] %s564
      %567 = dma.vmem_to_hbm [thread:$0]  %s563, 128, %s565, [#allocation13]
    $region77: #{vqvae_forward.1} parent=1 // pred_fallthru
      _
    // Predicated region
    $region78: #{vqvae_forward.1} parent=1 // pred_check
      _
    $region79: #{vqvae_forward.1} parent=1 // pred_check_branch
      %569 = sbr.rel (0) target = $region81
    $region80: #{vqvae_forward.1} parent=1 // pred_region
      %571 = vsyncadd [#allocation13], 0
      %s573 = sshll.u32 [#allocation14], 4
      %s574 = int_to_ptr.vmem [resolvable:$true] %s573
      %s575 = sshll.u32 %s14, 4
      %s576 = int_to_ptr.hbm [resolvable:$true] %s575
      %578 = dma.vmem_to_hbm [thread:$0]  %s574, 128, %s576, [#allocation13]
    $region81: #{vqvae_forward.1} parent=1 // pred_fallthru
      _
    // Predicated region
    $region82: #{vqvae_forward.1} parent=1 // pred_check
      _
    $region83: #{vqvae_forward.1} parent=1 // pred_check_branch
      %580 = sbr.rel (0) target = $region85
    $region84: #{vqvae_forward.1} parent=1 // pred_region
      _
    $region85: #{vqvae_forward.1} parent=1 // pred_fallthru
      _
    // Predicated region
    $region86: #{vqvae_forward.1} parent=1 // pred_check
      _
    $region87: #{vqvae_forward.1} parent=1 // pred_check_branch
      %582 = sbr.rel (0) target = $region89
    $region88: #{vqvae_forward.1} parent=1 // pred_region
      %584 = dma.done [#allocation4], 128
    $region89: #{vqvae_forward.1} parent=1 // pred_fallthru
      _
    // Predicated region
    $region90: #{vqvae_forward.1} parent=1 // pred_check
      _
    $region91: #{vqvae_forward.1} parent=1 // pred_check_branch
      %586 = sbr.rel (0) target = $region93
    $region92: #{vqvae_forward.1} parent=1 // pred_region
      %588 = dma.done [#allocation13], 128
    $region93: #{vqvae_forward.1} parent=1 // pred_fallthru
      _
    // Predicated region
    $region94: #{vqvae_forward.1} parent=1 // pred_check
      _
    $region95: #{vqvae_forward.1} parent=1 // pred_check_branch
      %590 = sbr.rel (0) target = $region97
    $region96: #{vqvae_forward.1} parent=1 // pred_region
      %592 = dma.done [#allocation13], 128
    $region97: #{vqvae_forward.1} parent=1 // pred_fallthru
      _
    // Predicated region
    $region98: #{vqvae_forward.1} parent=1 // pred_check
      _
    $region99: #{vqvae_forward.1} parent=1 // pred_check_branch
      %594 = sbr.rel (0) target = $region101
    $region100: #{vqvae_forward.1} parent=1 // pred_region
      _
    $region101: #{vqvae_forward.1} parent=1 // pred_fallthru
      _
    %595 = vsyncpa [#allocation3], 1
    %596 = vsyncpa [#allocation6], 1
    %597 = vsyncpa [#allocation9], 1
    %598 = vsyncpa [#allocation4], 1
    %599 = vsyncpa [#allocation13], 1

</llo_original>
